<compile_context>
chip_gen: v5e
topology: v5e:2x2
jax: 0.10.0
libtpu: 0.0.40
codegen_flags: <defaults>
</compile_context>

<pallas_src>
import functools

import jax
import jax.numpy as jnp
from jax.experimental import pallas as pl
from jax.experimental.pallas import tpu as pltpu

HIDDEN_SIZE = 128
LANE = 128             # TPU lane width; layer-2 output is zero-padded to this for lane-dense stores
DEFAULT_TILE_B = 2048  # rows per grid step (multiple of 8 sublanes); ~2-3 MiB VMEM, fine on all gens


def _round_up(n, m):
    return ((n + m - 1) // m) * m


def _cdiv(a, b):
    return -(-a // b)


def _mlp_kernel(x_ref, w1_ref, b1_ref, w2_ref, b2_ref, o_ref):
    # Hot path: two MXU matmuls (f32 accumulation) + VPU bias/ReLU, fully VMEM-resident.
    x = x_ref[...].astype(w1_ref.dtype)                                  # cast in VMEM (free on VPU)
    h = jnp.dot(x, w1_ref[...], preferred_element_type=jnp.float32)     # [tb, H]  (f32 acc)
    h = jnp.maximum(h + b1_ref[...], 0.0)                               # bias+ReLU in f32 (v5e-safe)
    y = jnp.dot(h.astype(w2_ref.dtype), w2_ref[...],
                preferred_element_type=jnp.float32)                     # [tb, OUT_PAD]
    o_ref[...] = (y + b2_ref[...]).astype(o_ref.dtype)                  # lane-dense (128-wide) store


def prepare_params(w1, b1, w2, b2, compute_dtype=jnp.bfloat16):
    """One-time parameter prep (do NOT call per forward step).

    w1: [H, IN], b1: [H], w2: [OUT, H], b2: [OUT]   (PyTorch Linear layout)
    Returns arrays already in kernel layout:
      w1_t [IN, H], b1 [1, H], w2_p [H, OUT_PAD], b2_p [1, OUT_PAD]  (OUT_PAD = ceil(OUT/128)*128)

    compute_dtype=jnp.bfloat16 (default) feeds the MXU in bf16 with f32 accumulation:
    ~0.5-1% relative error vs. the f32 PyTorch module for general dense inputs.
    Pass compute_dtype=jnp.float32 for exact module numerics.
    """
    out_dim = int(w2.shape[0])
    out_pad = _round_up(max(out_dim, 1), LANE)
    w1_t = jnp.asarray(w1, compute_dtype).T                             # [IN, H]
    b1_r = jnp.asarray(b1, jnp.float32)[None, :]                        # [1, H]  (bias kept in f32)
    w2_t = jnp.asarray(w2, compute_dtype).T                             # [H, OUT]
    w2_p = jnp.zeros((w2_t.shape[0], out_pad), compute_dtype).at[:, :out_dim].set(w2_t)
    b2_p = jnp.zeros((1, out_pad), jnp.float32).at[0, :out_dim].set(jnp.asarray(b2, jnp.float32))
    return {"w1_t": w1_t, "b1": b1_r, "w2_p": w2_p, "b2_p": b2_p, "out_dim": out_dim}


@functools.partial(jax.jit, static_argnames=("out_dim", "tile_b", "out_dtype", "out_padded"))
def _net_forward_impl(x, w1_t, b1_r, w2_p, b2_p, *, out_dim, tile_b, out_dtype, out_padded):
    B, IN = x.shape
    H = w1_t.shape[1]
    out_pad = w2_p.shape[1]

    # ---- adaptive batch tiling (all static Python ints at trace time) ----
    tile_b = max(8, (tile_b // 8) * 8)           # keep tiles a multiple of 8 sublanes
    n_tiles = max(1, _cdiv(B, tile_b))
    if n_tiles < 2 and B > 8:
        n_tiles = 2                              # v7x: give the "parallel" axis >= 2 steps (2 TCs)
    tb = _round_up(_cdiv(B, n_tiles), 8)         # balanced tiles; no coarse b_pad overshoot
    grid = (_cdiv(B, tb),)                       # ragged last tile handled by Pallas (masked writes)

    flops = 2 * B * (IN * H + H * out_pad)
    bytes_accessed = (
        B * IN * jnp.dtype(x.dtype).itemsize
        + B * out_pad * jnp.dtype(out_dtype).itemsize
        + w1_t.size * jnp.dtype(w1_t.dtype).itemsize
        + w2_p.size * jnp.dtype(w2_p.dtype).itemsize
        + (b1_r.size + b2_p.size) * 4
    )

    y = pl.pallas_call(
        _mlp_kernel,
        out_shape=jax.ShapeDtypeStruct((B, out_pad), out_dtype),
        grid=grid,
        in_specs=[
            pl.BlockSpec((tb, IN), lambda i: (i, 0)),    # x tile marches over batch
            # Constant block index => Pallas skips the re-DMA after step 0; weights/biases
            # stay VMEM-resident for the whole batch loop.
            pl.BlockSpec((IN, H), lambda i: (0, 0)),
            pl.BlockSpec((1, H), lambda i: (0, 0)),
            pl.BlockSpec((H, out_pad), lambda i: (0, 0)),
            pl.BlockSpec((1, out_pad), lambda i: (0, 0)),
        ],
        out_specs=pl.BlockSpec((tb, out_pad), lambda i: (i, 0)),
        compiler_params=pltpu.CompilerParams(
            dimension_semantics=("parallel",),           # batch axis shards across TCs (v7x)
        ),
        cost_estimate=pl.CostEstimate(
            flops=flops, transcendentals=0, bytes_accessed=bytes_accessed),
    )(x, w1_t, b1_r, w2_p, b2_p)

    if out_padded:
        return y                                         # [B, OUT_PAD] slab, no slice copy
    return y[:, :out_dim]


def net_forward(x, params, *, tile_b=DEFAULT_TILE_B, out_dtype=jnp.float32, out_padded=False):
    """Forward pass of Net: x [B, IN] -> [B, OUT] (or [B, OUT_PAD] if out_padded=True).

    `params` comes from prepare_params().  Pass out_dtype=jnp.bfloat16 and/or
    out_padded=True to cut the output HBM traffic; columns >= params['out_dim'] of the
    padded slab are zeros of the second bias padding and must be ignored by the caller.
    """
    return _net_forward_impl(
        x, params["w1_t"], params["b1"], params["w2_p"], params["b2_p"],
        out_dim=params["out_dim"], tile_b=tile_b, out_dtype=out_dtype, out_padded=out_padded,
    )


def init_params(key, input_shape, output_shape):
    """Deterministic synthetic parameter init (PyTorch Linear shapes)."""
    k1, k2, k3, k4 = jax.random.split(key, 4)
    scale1 = 1.0 / jnp.sqrt(input_shape)
    scale2 = 1.0 / jnp.sqrt(HIDDEN_SIZE)
    w1 = jax.random.uniform(k1, (HIDDEN_SIZE, input_shape), jnp.float32, -scale1, scale1)
    b1 = jax.random.uniform(k2, (HIDDEN_SIZE,), jnp.float32, -scale1, scale1)
    w2 = jax.random.uniform(k3, (output_shape, HIDDEN_SIZE), jnp.float32, -scale2, scale2)
    b2 = jax.random.uniform(k4, (output_shape,), jnp.float32, -scale2, scale2)
    return w1, b1, w2, b2


if __name__ == "__main__":
    # FrozenLake: 16 discrete states (one-hot obs), 4 actions.
    BATCH, INPUT_SHAPE, OUTPUT_SHAPE = 8, 16, 4

    key = jax.random.PRNGKey(0)
    key, pkey, xkey, xkey2 = jax.random.split(key, 4)
    w1, b1, w2, b2 = init_params(pkey, INPUT_SHAPE, OUTPUT_SHAPE)

    # ---- exact f32 path (matches the PyTorch module numerics), small one-hot batch ----
    params_f32 = prepare_params(w1, b1, w2, b2, compute_dtype=jnp.float32)
    obs_idx = jax.random.randint(xkey, (BATCH,), 0, INPUT_SHAPE)
    x = jax.nn.one_hot(obs_idx, INPUT_SHAPE, dtype=jnp.float32)          # [8, 16]
    out = jax.block_until_ready(net_forward(x, params_f32))
    ref = jnp.maximum(x @ w1.T + b1, 0.0) @ w2.T + b2
    assert out.shape == (BATCH, OUTPUT_SHAPE)
    assert jnp.allclose(out, ref, atol=1e-5, rtol=1e-5)

    # ---- default bf16 inference path, large CEM-style batch ----
    # Exercises: multi-tile parallel grid, ragged last tile (no jnp.pad), bf16 MXU inputs,
    # bf16 lane-dense padded output slab consumed directly (no post-kernel slice copy).
    params_bf16 = prepare_params(w1, b1, w2, b2)                         # bf16 default
    B2 = 3000
    x2 = jax.random.normal(xkey2, (B2, INPUT_SHAPE), jnp.float32).astype(jnp.bfloat16)
    out2 = net_forward(x2, params_bf16, out_dtype=jnp.bfloat16, out_padded=True)
    out2 = jax.block_until_ready(out2)
    assert out2.shape == (B2, LANE)

    # bf16-emulated reference (bf16 MXU inputs, f32 accumulation) mirroring the kernel.
    h_ref = jnp.maximum(
        jnp.dot(x2, w1.astype(jnp.bfloat16).T, preferred_element_type=jnp.float32) + b1, 0.0)
    ref2 = jnp.dot(h_ref.astype(jnp.bfloat16), w2.astype(jnp.bfloat16).T,
                   preferred_element_type=jnp.float32) + b2
    assert jnp.allclose(out2[:, :OUTPUT_SHAPE].astype(jnp.float32), ref2, atol=2e-2, rtol=2e-2)

    print("KERNEL_OK")
</pallas_src>

<mosaic_0001>
module attributes {stable_mosaic.version = 11 : i64} {
  func.func @_mlp_kernel(%arg0: i32, %arg1: memref<8x16xf32, #tpu.memory_space<vmem>>, %arg2: memref<16x128xf32, #tpu.memory_space<vmem>>, %arg3: memref<1x128xf32, #tpu.memory_space<vmem>>, %arg4: memref<128x128xf32, #tpu.memory_space<vmem>>, %arg5: memref<1x128xf32, #tpu.memory_space<vmem>>, %arg6: memref<8x128xf32, #tpu.memory_space<vmem>>) attributes {dimension_semantics = [#tpu.dimension_semantics<parallel>], iteration_bounds = array<i64: 1>, scalar_prefetch = 0 : i64, scratch_operands = 0 : i64, tpu.core_type = #tpu.core_type<tc>, window_params = [{transform_indices = @transform_0, window_bounds = array<i64: 8, 16>}, {pipeline_mode = #tpu.pipeline_mode<synchronous>, transform_indices = @transform_1, window_bounds = array<i64: 16, 128>}, {pipeline_mode = #tpu.pipeline_mode<synchronous>, transform_indices = @transform_2, window_bounds = array<i64: 1, 128>}, {pipeline_mode = #tpu.pipeline_mode<synchronous>, transform_indices = @transform_3, window_bounds = array<i64: 128, 128>}, {pipeline_mode = #tpu.pipeline_mode<synchronous>, transform_indices = @transform_4, window_bounds = array<i64: 1, 128>}, {transform_indices = @transform_5, window_bounds = array<i64: 8, 128>}]} {
    %c0 = arith.constant 0 : index
    %c0_0 = arith.constant 0 : index
    %0 = vector.load %arg1[%c0, %c0_0] : memref<8x16xf32, #tpu.memory_space<vmem>>, vector<8x16xf32>
    %c0_1 = arith.constant 0 : index
    %c0_2 = arith.constant 0 : index
    %1 = vector.load %arg2[%c0_1, %c0_2] : memref<16x128xf32, #tpu.memory_space<vmem>>, vector<16x128xf32>
    %cst = arith.constant dense<0.000000e+00> : vector<8x128xf32>
    %2 = tpu.matmul %0, %1, %cst {dimension_numbers = #tpu.dot_dimension_numbers<[1], [0], [0], [1], [0, 0, 1, 1], [], []>} : vector<8x16xf32>, vector<16x128xf32>, vector<8x128xf32> -> vector<8x128xf32>
    %c0_3 = arith.constant 0 : index
    %c0_4 = arith.constant 0 : index
    %3 = vector.load %arg3[%c0_3, %c0_4] : memref<1x128xf32, #tpu.memory_space<vmem>>, vector<1x128xf32>
    %4 = vector.broadcast %3 : vector<1x128xf32> to vector<8x128xf32>
    %5 = arith.addf %2, %4 : vector<8x128xf32>
    %cst_5 = arith.constant 0.000000e+00 : f32
    %6 = vector.broadcast %cst_5 : f32 to vector<8x128xf32>
    %7 = arith.maximumf %5, %6 : vector<8x128xf32>
    %c0_6 = arith.constant 0 : index
    %c0_7 = arith.constant 0 : index
    %8 = vector.load %arg4[%c0_6, %c0_7] : memref<128x128xf32, #tpu.memory_space<vmem>>, vector<128x128xf32>
    %cst_8 = arith.constant dense<0.000000e+00> : vector<8x128xf32>
    %9 = tpu.matmul %7, %8, %cst_8 {dimension_numbers = #tpu.dot_dimension_numbers<[1], [0], [0], [1], [0, 0, 1, 1], [], []>} : vector<8x128xf32>, vector<128x128xf32>, vector<8x128xf32> -> vector<8x128xf32>
    %c0_9 = arith.constant 0 : index
    %c0_10 = arith.constant 0 : index
    %10 = vector.load %arg5[%c0_9, %c0_10] : memref<1x128xf32, #tpu.memory_space<vmem>>, vector<1x128xf32>
    %11 = vector.broadcast %10 : vector<1x128xf32> to vector<8x128xf32>
    %12 = arith.addf %9, %11 : vector<8x128xf32>
    %c0_11 = arith.constant 0 : index
    %c0_12 = arith.constant 0 : index
    %13 = vector.load %arg6[%c0_11, %c0_12] : memref<8x128xf32, #tpu.memory_space<vmem>>, vector<8x128xf32>
    tpu.vector_store %arg6[%c0_11, %c0_12], %12 {strides = array<i32>} : memref<8x128xf32, #tpu.memory_space<vmem>>, vector<8x128xf32>,
    return
  }
  func.func @transform_0(%arg0: i32) -> (i32, i32) {
    %c0_i32 = arith.constant 0 : i32
    %c0_i32_0 = arith.constant 0 : i32
    return %arg0, %c0_i32 : i32, i32
  }
  func.func @transform_1(%arg0: i32) -> (i32, i32) {
    %c0_i32 = arith.constant 0 : i32
    %c0_i32_0 = arith.constant 0 : i32
    %c0_i32_1 = arith.constant 0 : i32
    return %c0_i32, %c0_i32_0 : i32, i32
  }
  func.func @transform_2(%arg0: i32) -> (i32, i32) {
    %c0_i32 = arith.constant 0 : i32
    %c0_i32_0 = arith.constant 0 : i32
    %c0_i32_1 = arith.constant 0 : i32
    return %c0_i32, %c0_i32_0 : i32, i32
  }
  func.func @transform_3(%arg0: i32) -> (i32, i32) {
    %c0_i32 = arith.constant 0 : i32
    %c0_i32_0 = arith.constant 0 : i32
    %c0_i32_1 = arith.constant 0 : i32
    return %c0_i32, %c0_i32_0 : i32, i32
  }
  func.func @transform_4(%arg0: i32) -> (i32, i32) {
    %c0_i32 = arith.constant 0 : i32
    %c0_i32_0 = arith.constant 0 : i32
    %c0_i32_1 = arith.constant 0 : i32
    return %c0_i32, %c0_i32_0 : i32, i32
  }
  func.func @transform_5(%arg0: i32) -> (i32, i32) {
    %c0_i32 = arith.constant 0 : i32
    %c0_i32_0 = arith.constant 0 : i32
    return %arg0, %c0_i32 : i32, i32
  }
}

</mosaic_0001>

<llo_original>
// kernel: _net_forward_impl.1
$region0: #{_net_forward_impl.1}
  #allocation0 [shape = 'u32[]', space=smem, size = 0x4, offset = 0x4, fixed_abs, tag = 'smem constant byte address 0x4 - core index']
  #allocation1 [shape = 'u32[72,128]{1,0:T(1,128)}', space=vmem, size = 0x9000, scoped, tag = 'internal scratch']
  %s0 = inlined_call_operand.hbm [shape: f32[8,16], index: 0, kind: input, shape index: {}]
  %s1 = inlined_call_operand.hbm [shape: f32[16,128], index: 1, kind: input, shape index: {}]
  %s2 = inlined_call_operand.vmem [shape: f32[1,128], index: 2, kind: input, shape index: {}]
  %s3 = inlined_call_operand.hbm [shape: f32[128,128], index: 3, kind: input, shape index: {}]
  %s4 = inlined_call_operand.vmem [shape: f32[1,128], index: 4, kind: input, shape index: {}]
  %s5 = inlined_call_operand.vmem [shape: f32[8,128], index: 5, kind: output, shape index: {}]
  %s6 = sld [smem:[#allocation0]]
  $region42: #{_net_forward_impl.1} parent=0
    _
  %s8 = ssub.s32 1, %s6
  %s9 = scalar_select 0, %s8, %s6
  $region1: #{_net_forward_impl.1} parent=0
    #allocation2 [shape = 'u8[4096]{0}', space=vmem, size = 0x1000, scoped, tag = 'input window, operand 0, single buffered']
    #allocation3 [shape = 's32[1]{0}', space=sflag, size = 0x4, scoped, tag = 'scoped memory for _net_forward_impl.1']
    #allocation4 [shape = 'u8[8192]{0}', space=vmem, size = 0x2000, scoped, tag = 'input window, operand 1, single buffered']
    #allocation5 [shape = 's32[1]{0}', space=sflag, size = 0x4, scoped, tag = 'scoped memory for _net_forward_impl.1']
    #allocation6 [shape = 'u8[65536]{0}', space=vmem, size = 0x10000, scoped, tag = 'input window, operand 3, single buffered']
    %10 = vsyncpa [#allocation3], 0
    %11 = vsyncpa [#allocation5], 0
    // Predicated region
    $region2: #{_net_forward_impl.1} parent=1 // pred_check
      _
    $region3: #{_net_forward_impl.1} parent=1 // pred_check_branch
      %13 = sbr.rel (0) target = $region5
    $region4: #{_net_forward_impl.1} parent=1 // pred_region
      %15 = vsyncadd [#allocation3], 0
      %s17 = sshll.u32 %s0, 4
      %s18 = int_to_ptr.hbm [resolvable:$true] %s17
      %s19 = sshll.u32 [#allocation2], 4
      %s20 = int_to_ptr.vmem [resolvable:$true] %s19
      %22 = dma.hbm_to_vmem [thread:$0]  %s18, 128, %s20, [#allocation3]
    $region5: #{_net_forward_impl.1} parent=1 // pred_fallthru
      _
    // Predicated region
    $region6: #{_net_forward_impl.1} parent=1 // pred_check
      _
    $region7: #{_net_forward_impl.1} parent=1 // pred_check_branch
      %24 = sbr.rel (0) target = $region9
    $region8: #{_net_forward_impl.1} parent=1 // pred_region
      %26 = vsyncadd [#allocation5], 0
      %s27 = sshll.u32 %s1, 4
      %s28 = int_to_ptr.hbm [resolvable:$true] %s27
      %s29 = sshll.u32 [#allocation4], 4
      %s30 = int_to_ptr.vmem [resolvable:$true] %s29
      %35 = dma.hbm_to_vmem [thread:$0]  %s28, 256, %s30, [#allocation5], 128, 128, 8
    $region9: #{_net_forward_impl.1} parent=1 // pred_fallthru
      _
    // Predicated region
    $region10: #{_net_forward_impl.1} parent=1 // pred_check
      _
    $region11: #{_net_forward_impl.1} parent=1 // pred_check_branch
      %37 = sbr.rel (0) target = $region13
    $region12: #{_net_forward_impl.1} parent=1 // pred_region
      _
    $region13: #{_net_forward_impl.1} parent=1 // pred_fallthru
      _
    // Predicated region
    $region14: #{_net_forward_impl.1} parent=1 // pred_check
      _
    $region15: #{_net_forward_impl.1} parent=1 // pred_check_branch
      %39 = sbr.rel (0) target = $region17
    $region16: #{_net_forward_impl.1} parent=1 // pred_region
      %41 = vsyncadd [#allocation5], 0
      %s42 = sshll.u32 %s3, 4
      %s43 = int_to_ptr.hbm [resolvable:$true] %s42
      %s44 = sshll.u32 [#allocation6], 4
      %s45 = int_to_ptr.vmem [resolvable:$true] %s44
      %50 = dma.hbm_to_vmem [thread:$0]  %s43, 2048, %s45, [#allocation5], 128, 128, 8
    $region17: #{_net_forward_impl.1} parent=1 // pred_fallthru
      _
    // Predicated region
    $region18: #{_net_forward_impl.1} parent=1 // pred_check
      _
    $region19: #{_net_forward_impl.1} parent=1 // pred_check_branch
      %52 = sbr.rel (0) target = $region21
    $region20: #{_net_forward_impl.1} parent=1 // pred_region
      _
    $region21: #{_net_forward_impl.1} parent=1 // pred_fallthru
      _
    // Predicated region
    $region22: #{_net_forward_impl.1} parent=1 // pred_check
      _
    $region23: #{_net_forward_impl.1} parent=1 // pred_check_branch
      %54 = sbr.rel (0) target = $region25
    $region24: #{_net_forward_impl.1} parent=1 // pred_region
      %56 = dma.done [#allocation3], 128
    $region25: #{_net_forward_impl.1} parent=1 // pred_fallthru
      _
    // Predicated region
    $region26: #{_net_forward_impl.1} parent=1 // pred_check
      _
    $region27: #{_net_forward_impl.1} parent=1 // pred_check_branch
      %58 = sbr.rel (0) target = $region29
    $region28: #{_net_forward_impl.1} parent=1 // pred_region
      %60 = dma.done [#allocation5], 256
    $region29: #{_net_forward_impl.1} parent=1 // pred_fallthru
      _
    // Predicated region
    $region30: #{_net_forward_impl.1} parent=1 // pred_check
      _
    $region31: #{_net_forward_impl.1} parent=1 // pred_check_branch
      %62 = sbr.rel (0) target = $region33
    $region32: #{_net_forward_impl.1} parent=1 // pred_region
      %64 = dma.done [#allocation5], 2048
    $region33: #{_net_forward_impl.1} parent=1 // pred_fallthru
      _
    %v65 = vld [vmem:[#allocation2] sm:$0xff]
    %v66 = vld [vmem:[#allocation4] sm:$0xff]
    %v67 = vld [vmem:[#allocation4 + $0x8] sm:$0xff]
    %v68 = vld [vmem:[%s2] sm:$0x1]
    %v70 = vperm.slane %v68, 0
    %vm72 = vcmask 130048
    %v74 = vsel %vm72, %v65, 0
    %76 = vmatpush.msra.mxu0 0.0
    %77 = vmatpush.msra.mxu0 0.0
    %78 = vmatpush.msra.mxu0 0.0
    %79 = vmatpush.msra.mxu0 0.0
    %80 = vmatpush.msra.mxu0 0.0
    %81 = vmatpush.msra.mxu0 0.0
    %82 = vmatpush.msra.mxu0 0.0
    %83 = vmatpush.msra.mxu0 0.0
    %84 = vmatpush.msra.mxu0 0.0
    %85 = vmatpush.msra.mxu0 0.0
    %86 = vmatpush.msra.mxu0 0.0
    %87 = vmatpush.msra.mxu0 0.0
    %88 = vmatpush.msra.mxu0 0.0
    %89 = vmatpush.msra.mxu0 0.0
    %90 = vmatpush.msra.mxu0 %v67
    %91 = vmatpush.msra.mxu0 %v66
    %92 = vmatmul.f32.gmra.mxu0 %v74
    %v93 = vpop.f32.mrf.mxu0
    %v94 = vadd.f32 %v70, %v93
    %95 = vdwg.mxu0
    %v96 = vmax.f32 %v94, 0.0
    %v97 = vld [vmem:[#allocation6] sm:$0xff]
    %v98 = vld [vmem:[#allocation6 + $0x8] sm:$0xff]
    %v99 = vld [vmem:[#allocation6 + $0x10] sm:$0xff]
    %v100 = vld [vmem:[#allocation6 + $0x18] sm:$0xff]
    %v101 = vld [vmem:[#allocation6 + $0x20] sm:$0xff]
    %v102 = vld [vmem:[#allocation6 + $0x28] sm:$0xff]
    %v103 = vld [vmem:[#allocation6 + $0x30] sm:$0xff]
    %v104 = vld [vmem:[#allocation6 + $0x38] sm:$0xff]
    %v105 = vld [vmem:[#allocation6 + $0x40] sm:$0xff]
    %v106 = vld [vmem:[#allocation6 + $0x48] sm:$0xff]
    %v107 = vld [vmem:[#allocation6 + $0x50] sm:$0xff]
    %v108 = vld [vmem:[#allocation6 + $0x58] sm:$0xff]
    %v109 = vld [vmem:[#allocation6 + $0x60] sm:$0xff]
    %v110 = vld [vmem:[#allocation6 + $0x68] sm:$0xff]
    %v111 = vld [vmem:[#allocation6 + $0x70] sm:$0xff]
    %v112 = vld [vmem:[#allocation6 + $0x78] sm:$0xff]
    %v113 = vld [vmem:[%s4] sm:$0x1]
    %v115 = vperm.slane %v113, 0
    %117 = vmatpush.msra.mxu0 %v112
    %118 = vmatpush.msra.mxu0 %v111
    %119 = vmatpush.msra.mxu0 %v110
    %120 = vmatpush.msra.mxu0 %v109
    %121 = vmatpush.msra.mxu0 %v108
    %122 = vmatpush.msra.mxu0 %v107
    %123 = vmatpush.msra.mxu0 %v106
    %124 = vmatpush.msra.mxu0 %v105
    %125 = vmatpush.msra.mxu0 %v104
    %126 = vmatpush.msra.mxu0 %v103
    %127 = vmatpush.msra.mxu0 %v102
    %128 = vmatpush.msra.mxu0 %v101
    %129 = vmatpush.msra.mxu0 %v100
    %130 = vmatpush.msra.mxu0 %v99
    %131 = vmatpush.msra.mxu0 %v98
    %132 = vmatpush.msra.mxu0 %v97
    %133 = vmatmul.f32.gmra.mxu0 %v96
    %v134 = vpop.f32.mrf.mxu0
    %v135 = vadd.f32 %v115, %v134
    %136 = vdwg.mxu0
    %137 = vst [vmem:[%s5] sm:$0xff] %v135
    // Predicated region
    $region34: #{_net_forward_impl.1} parent=1 // pred_check
      _
    $region35: #{_net_forward_impl.1} parent=1 // pred_check_branch
      %139 = sbr.rel (0) target = $region37
    $region36: #{_net_forward_impl.1} parent=1 // pred_region
      _
    $region37: #{_net_forward_impl.1} parent=1 // pred_fallthru
      _
    // Predicated region
    $region38: #{_net_forward_impl.1} parent=1 // pred_check
      _
    $region39: #{_net_forward_impl.1} parent=1 // pred_check_branch
      %141 = sbr.rel (0) target = $region41
    $region40: #{_net_forward_impl.1} parent=1 // pred_region
      _
    $region41: #{_net_forward_impl.1} parent=1 // pred_fallthru
      _
    %142 = vsyncpa [#allocation3], 1
    %143 = vsyncpa [#allocation5], 1

</llo_original>
